<compile_context>
chip_gen: v6e
topology: v6e:2x2x1
jax: 0.10.0
libtpu: 0.0.40
codegen_flags: <defaults>
</compile_context>

<pallas_src>
import jax
import jax.numpy as jnp
import numpy as np
from jax.experimental import pallas as pl
from jax.experimental.pallas import tpu as pltpu

K_PAD = 8          # fc1 contraction padded from 6 up to the sublane width.
MAX_TILE_B = 1024  # batch-tile cap (lane axis); multiple of 128.


def _round_up(n, m):
    return ((n + m - 1) // m) * m


def _mlp_kernel(xt_ref, w1t_ref, b1_ref, w2t_ref, b2_ref, w3_ref, b3_ref,
                o_ref):
    # fc1_: Linear(6->128) + ReLU.  (128, 8) @ (8, TILE_B) on the MXU.
    h1 = jnp.dot(w1t_ref[...], xt_ref[...],
                 preferred_element_type=jnp.float32)
    h1 = jnp.maximum(h1 + b1_ref[...], 0.0)                  # (128, TILE_B) f32
    # fc2_: Linear(128->128) + ReLU.  bf16 operands, f32 accumulation.
    h2 = jnp.dot(w2t_ref[...], h1.astype(jnp.bfloat16),
                 preferred_element_type=jnp.float32)
    h2 = jnp.maximum(h2 + b2_ref[...], 0.0)                  # (128, TILE_B) f32
    # fc3_: Linear(128->1).  VPU multiply + cross-sublane reduce (skip the
    # nearly-empty N=1 MXU pass); result is a lane-dense (1, TILE_B) row.
    out = jnp.sum(h2 * w3_ref[...], axis=0, keepdims=True)   # (1, TILE_B) f32
    o_ref[...] = out + b3_ref[0, 0]


@jax.jit
def alt_dqn_forward(x, params):
    """Forward pass of AltDeepQNetwork.  x: (B, F), F >= 6.  Returns (B, 1) f32."""
    w1t, b1c, w2t, b2c, w3c, b3 = params
    B = x.shape[0]

    # Live branch only: last 6 features (the x0 / CNN path is dead code).
    x1 = x[:, -6:].astype(jnp.float32)

    # Batch tile: multiple of 128 (lane width), capped; pad batch so the grid
    # divides evenly (padded lanes are zero and dropped after the call).
    tile_b = min(MAX_TILE_B, _round_up(B, 128))
    b_pad = _round_up(B, tile_b)
    nb = b_pad // tile_b

    # Transposed + padded input: (K_PAD, b_pad) bf16, batch on the lane axis.
    xt = jnp.zeros((K_PAD, b_pad), jnp.bfloat16)
    xt = xt.at[:6, :B].set(x1.T.astype(jnp.bfloat16))

    flops = 2 * b_pad * (K_PAD * 128 + 128 * 128 + 128)
    bytes_accessed = (
        K_PAD * b_pad * 2 + b_pad * 4          # input tile stream + output
        + 128 * K_PAD * 2 + 128 * 128 * 2      # bf16 weights (resident)
        + 3 * 128 * 4 + 4)                     # f32 biases + w3 column + b3

    out_t = pl.pallas_call(
        _mlp_kernel,
        out_shape=jax.ShapeDtypeStruct((1, b_pad), jnp.float32),
        grid=(nb,),
        in_specs=[
            pl.BlockSpec((K_PAD, tile_b), lambda i: (0, i)),    # x tile
            pl.BlockSpec((128, K_PAD), lambda i: (0, 0)),       # w1^T (resident)
            pl.BlockSpec((128, 1), lambda i: (0, 0)),           # b1
            pl.BlockSpec((128, 128), lambda i: (0, 0)),         # w2^T (resident)
            pl.BlockSpec((128, 1), lambda i: (0, 0)),           # b2
            pl.BlockSpec((128, 1), lambda i: (0, 0)),           # w3
            pl.BlockSpec(memory_space=pltpu.MemorySpace.SMEM),  # b3 scalar
        ],
        out_specs=pl.BlockSpec((1, tile_b), lambda i: (0, i)),
        compiler_params=pltpu.CompilerParams(
            dimension_semantics=("parallel",),
            vmem_limit_bytes=32 * 1024 * 1024),
        cost_estimate=pl.CostEstimate(
            flops=flops, transcendentals=0, bytes_accessed=bytes_accessed),
    )(xt, w1t, b1c, w2t, b2c, w3c, b3)

    return out_t[0, :B].reshape(B, 1)


def _xavier_uniform(key, fan_in, fan_out):
    # Matches torch.nn.init.xavier_uniform_ bound (gain=1); bound is symmetric
    # so generating in (in, out) orientation is distributionally equivalent.
    bound = float(np.sqrt(6.0 / (fan_in + fan_out)))
    return jax.random.uniform(key, (fan_in, fan_out), dtype=jnp.float32,
                              minval=-bound, maxval=bound)


def init_params(key):
    k1, k2, k3 = jax.random.split(key, 3)
    w1 = _xavier_uniform(k1, 6, 128)
    w2 = _xavier_uniform(k2, 128, 128)
    w3 = _xavier_uniform(k3, 128, 1)
    # Compute layout: transposed, contraction-padded, matmul operands in bf16.
    w1t = jnp.zeros((128, K_PAD), jnp.float32).at[:, :6].set(w1.T)
    w1t = w1t.astype(jnp.bfloat16)          # (128, 8)  bf16
    w2t = w2.T.astype(jnp.bfloat16)         # (128, 128) bf16
    b1c = jnp.zeros((128, 1), jnp.float32)
    b2c = jnp.zeros((128, 1), jnp.float32)
    w3c = w3.astype(jnp.float32)            # (128, 1)  f32 (VPU reduction)
    b3 = jnp.zeros((1, 1), jnp.float32)
    return (w1t, b1c, w2t, b2c, w3c, b3)


def _reference_forward(x, params):
    # Pure-JAX reference with the same bf16-matmul / f32-accumulate math.
    w1t, b1c, w2t, b2c, w3c, b3 = params
    x1 = x[:, -6:].astype(jnp.float32)
    xt = jnp.pad(x1.T, ((0, K_PAD - 6), (0, 0))).astype(jnp.bfloat16)
    h1 = jnp.maximum(
        jnp.dot(w1t, xt, preferred_element_type=jnp.float32) + b1c, 0.0)
    h2 = jnp.maximum(
        jnp.dot(w2t, h1.astype(jnp.bfloat16),
                preferred_element_type=jnp.float32) + b2c, 0.0)
    out = jnp.sum(h2 * w3c, axis=0, keepdims=True) + b3[0, 0]
    return out.T


if __name__ == "__main__":
    key = jax.random.PRNGKey(0)
    k_param, k_x = jax.random.split(key)
    params = init_params(k_param)

    # TODO(synk): cnn_1/cnn_2/fc towers are dead code in forward() (x0 is
    # discarded), so they are intentionally not implemented.

    # Observation layout implied by forward(): 20*10 board cells + 6 features.
    F = 206
    for B in (2, 130):
        x = jax.random.normal(jax.random.fold_in(k_x, B), (B, F),
                              dtype=jnp.float32)
        out = jax.block_until_ready(alt_dqn_forward(x, params))
        ref = _reference_forward(x, params)
        assert out.shape == (B, 1), out.shape
        assert jnp.allclose(out, ref, atol=1e-2, rtol=1e-2), (
            float(jnp.max(jnp.abs(out - ref))))

    # Exercise the bias paths (xavier init zeroes biases, so perturb them).
    w1t, b1c, w2t, b2c, w3c, b3 = params
    params_nz = (w1t, b1c + 0.1, w2t, b2c - 0.05, w3c, b3 + 0.25)
    x = jax.random.normal(jax.random.fold_in(k_x, 999), (2, F),
                          dtype=jnp.float32)
    out = jax.block_until_ready(alt_dqn_forward(x, params_nz))
    ref = _reference_forward(x, params_nz)
    assert jnp.allclose(out, ref, atol=1e-2, rtol=1e-2), (
        float(jnp.max(jnp.abs(out - ref))))

    print("KERNEL_OK")
</pallas_src>

<mosaic_0001>
module attributes {stable_mosaic.version = 11 : i64} {
  func.func @_mlp_kernel(%arg0: i32, %arg1: memref<8x128xbf16, #tpu.memory_space<vmem>>, %arg2: memref<128x8xbf16, #tpu.memory_space<vmem>>, %arg3: memref<128x1xf32, #tpu.memory_space<vmem>>, %arg4: memref<128x128xbf16, #tpu.memory_space<vmem>>, %arg5: memref<128x1xf32, #tpu.memory_space<vmem>>, %arg6: memref<128x1xf32, #tpu.memory_space<vmem>>, %arg7: memref<1x1xf32, #tpu.memory_space<smem>>, %arg8: memref<1x128xf32, #tpu.memory_space<vmem>>) attributes {dimension_semantics = [#tpu.dimension_semantics<parallel>], iteration_bounds = array<i64: 1>, scalar_prefetch = 0 : i64, scratch_operands = 0 : i64, tpu.core_type = #tpu.core_type<tc>, window_params = [{transform_indices = @transform_0, window_bounds = array<i64: 8, 128>}, {pipeline_mode = #tpu.pipeline_mode<synchronous>, transform_indices = @transform_1, window_bounds = array<i64: 128, 8>}, {pipeline_mode = #tpu.pipeline_mode<synchronous>, transform_indices = @transform_2, window_bounds = array<i64: 128, 1>}, {pipeline_mode = #tpu.pipeline_mode<synchronous>, transform_indices = @transform_3, window_bounds = array<i64: 128, 128>}, {pipeline_mode = #tpu.pipeline_mode<synchronous>, transform_indices = @transform_4, window_bounds = array<i64: 128, 1>}, {pipeline_mode = #tpu.pipeline_mode<synchronous>, transform_indices = @transform_5, window_bounds = array<i64: 128, 1>}, {transform_indices = @transform_6, window_bounds = array<i64: 1, 1>}, {transform_indices = @transform_7, window_bounds = array<i64: 1, 128>}]} {
    %c0 = arith.constant 0 : index
    %c0_0 = arith.constant 0 : index
    %0 = vector.load %arg2[%c0, %c0_0] : memref<128x8xbf16, #tpu.memory_space<vmem>>, vector<128x8xbf16>
    %c0_1 = arith.constant 0 : index
    %c0_2 = arith.constant 0 : index
    %1 = vector.load %arg1[%c0_1, %c0_2] : memref<8x128xbf16, #tpu.memory_space<vmem>>, vector<8x128xbf16>
    %cst = arith.constant dense<0.000000e+00> : vector<128x128xf32>
    %2 = tpu.matmul %0, %1, %cst {dimension_numbers = #tpu.dot_dimension_numbers<[1], [0], [0], [1], [0, 0, 1, 1], [], []>} : vector<128x8xbf16>, vector<8x128xbf16>, vector<128x128xf32> -> vector<128x128xf32>
    %c0_3 = arith.constant 0 : index
    %c0_4 = arith.constant 0 : index
    %3 = vector.load %arg3[%c0_3, %c0_4] : memref<128x1xf32, #tpu.memory_space<vmem>>, vector<128x1xf32>
    %4 = vector.broadcast %3 : vector<128x1xf32> to vector<128x128xf32>
    %5 = arith.addf %2, %4 : vector<128x128xf32>
    %cst_5 = arith.constant 0.000000e+00 : f32
    %6 = vector.broadcast %cst_5 : f32 to vector<128x128xf32>
    %7 = arith.maximumf %5, %6 : vector<128x128xf32>
    %c0_6 = arith.constant 0 : index
    %c0_7 = arith.constant 0 : index
    %8 = vector.load %arg4[%c0_6, %c0_7] : memref<128x128xbf16, #tpu.memory_space<vmem>>, vector<128x128xbf16>
    %9 = arith.truncf %7 : vector<128x128xf32> to vector<128x128xbf16>
    %cst_8 = arith.constant dense<0.000000e+00> : vector<128x128xf32>
    %10 = tpu.matmul %8, %9, %cst_8 {dimension_numbers = #tpu.dot_dimension_numbers<[1], [0], [0], [1], [0, 0, 1, 1], [], []>} : vector<128x128xbf16>, vector<128x128xbf16>, vector<128x128xf32> -> vector<128x128xf32>
    %c0_9 = arith.constant 0 : index
    %c0_10 = arith.constant 0 : index
    %11 = vector.load %arg5[%c0_9, %c0_10] : memref<128x1xf32, #tpu.memory_space<vmem>>, vector<128x1xf32>
    %12 = vector.broadcast %11 : vector<128x1xf32> to vector<128x128xf32>
    %13 = arith.addf %10, %12 : vector<128x128xf32>
    %cst_11 = arith.constant 0.000000e+00 : f32
    %14 = vector.broadcast %cst_11 : f32 to vector<128x128xf32>
    %15 = arith.maximumf %13, %14 : vector<128x128xf32>
    %c0_12 = arith.constant 0 : index
    %c0_13 = arith.constant 0 : index
    %16 = vector.load %arg6[%c0_12, %c0_13] : memref<128x1xf32, #tpu.memory_space<vmem>>, vector<128x1xf32>
    %17 = vector.broadcast %16 : vector<128x1xf32> to vector<128x128xf32>
    %18 = arith.mulf %15, %17 : vector<128x128xf32>
    %cst_14 = arith.constant dense<0.000000e+00> : vector<128xf32>
    %19 = vector.multi_reduction <add>, %18, %cst_14 [0] : vector<128x128xf32> to vector<128xf32>
    %20 = vector.shape_cast %19 : vector<128xf32> to vector<1x128xf32>
    %c0_15 = arith.constant 0 : index
    %c0_16 = arith.constant 0 : index
    %21 = memref.load %arg7[%c0_15, %c0_16] : memref<1x1xf32, #tpu.memory_space<smem>>
    %22 = vector.broadcast %21 : f32 to vector<1x128xf32>
    %23 = arith.addf %20, %22 : vector<1x128xf32>
    %c0_17 = arith.constant 0 : index
    %c0_18 = arith.constant 0 : index
    %24 = vector.load %arg8[%c0_17, %c0_18] : memref<1x128xf32, #tpu.memory_space<vmem>>, vector<1x128xf32>
    tpu.vector_store %arg8[%c0_17, %c0_18], %23 {strides = array<i32>} : memref<1x128xf32, #tpu.memory_space<vmem>>, vector<1x128xf32>,
    return
  }
  func.func @transform_0(%arg0: i32) -> (i32, i32) {
    %c0_i32 = arith.constant 0 : i32
    %c0_i32_0 = arith.constant 0 : i32
    return %c0_i32, %arg0 : i32, i32
  }
  func.func @transform_1(%arg0: i32) -> (i32, i32) {
    %c0_i32 = arith.constant 0 : i32
    %c0_i32_0 = arith.constant 0 : i32
    %c0_i32_1 = arith.constant 0 : i32
    return %c0_i32, %c0_i32_0 : i32, i32
  }
  func.func @transform_2(%arg0: i32) -> (i32, i32) {
    %c0_i32 = arith.constant 0 : i32
    %c0_i32_0 = arith.constant 0 : i32
    %c0_i32_1 = arith.constant 0 : i32
    return %c0_i32, %c0_i32_0 : i32, i32
  }
  func.func @transform_3(%arg0: i32) -> (i32, i32) {
    %c0_i32 = arith.constant 0 : i32
    %c0_i32_0 = arith.constant 0 : i32
    %c0_i32_1 = arith.constant 0 : i32
    return %c0_i32, %c0_i32_0 : i32, i32
  }
  func.func @transform_4(%arg0: i32) -> (i32, i32) {
    %c0_i32 = arith.constant 0 : i32
    %c0_i32_0 = arith.constant 0 : i32
    %c0_i32_1 = arith.constant 0 : i32
    return %c0_i32, %c0_i32_0 : i32, i32
  }
  func.func @transform_5(%arg0: i32) -> (i32, i32) {
    %c0_i32 = arith.constant 0 : i32
    %c0_i32_0 = arith.constant 0 : i32
    %c0_i32_1 = arith.constant 0 : i32
    return %c0_i32, %c0_i32_0 : i32, i32
  }
  func.func @transform_6(%arg0: i32) -> (i32, i32) {
    %c0_i32 = arith.constant 0 : i32
    %c0_i32_0 = arith.constant 0 : i32
    %c0_i32_1 = arith.constant 0 : i32
    return %c0_i32, %c0_i32_0 : i32, i32
  }
  func.func @transform_7(%arg0: i32) -> (i32, i32) {
    %c0_i32 = arith.constant 0 : i32
    %c0_i32_0 = arith.constant 0 : i32
    return %c0_i32, %arg0 : i32, i32
  }
}

</mosaic_0001>

<llo_original>
// kernel: alt_dqn_forward.1
$region0: #{alt_dqn_forward.1}
  #allocation0 [shape = 'u32[]', space=smem, size = 0x4, offset = 0x4, fixed_abs, tag = 'smem constant byte address 0x4 - core index']
  #allocation1 [shape = 'u32[144,128]{1,0:T(1,128)}', space=vmem, size = 0x12000, scoped, tag = 'internal scratch']
  #allocation2 [shape = 'f32[1,1]{1,0:T(1,128)S(6)}', space=smem, size = 0x200, scoped, tag = 'scoped memory for alt_dqn_forward.1']
  %s0 = inlined_call_operand.vmem [shape: bf16[8,128], index: 0, kind: input, shape index: {}]
  %s1 = inlined_call_operand.vmem [shape: bf16[128,8], index: 1, kind: input, shape index: {}]
  %s2 = inlined_call_operand.vmem [shape: f32[128,1], index: 2, kind: input, shape index: {}]
  %s3 = inlined_call_operand.vmem [shape: bf16[128,128], index: 3, kind: input, shape index: {}]
  %s4 = inlined_call_operand.vmem [shape: f32[128,1], index: 4, kind: input, shape index: {}]
  %s5 = inlined_call_operand.vmem [shape: f32[128,1], index: 5, kind: input, shape index: {}]
  %s6 = inlined_call_operand.<no memory space> [shape: f32[1,1], index: 6, kind: input, shape index: {}]
  %s7 = inlined_call_operand.vmem [shape: f32[1,128], index: 7, kind: output, shape index: {}]
  %s8 = sld [smem:[#allocation0]]
  $region38: #{alt_dqn_forward.1} parent=0
    _
  %s10 = ssub.s32 1, %s8
  %s11 = scalar_select 0, %s10, %s8
  %12 = sst [smem:[#allocation2]] %s6
  // Predicated region
  $region2: #{alt_dqn_forward.1} parent=0 // pred_check
    _
  $region3: #{alt_dqn_forward.1} parent=0 // pred_check_branch
    %14 = sbr.rel (0) target = $region5
  $region4: #{alt_dqn_forward.1} parent=0 // pred_region
    _
  $region5: #{alt_dqn_forward.1} parent=0 // pred_fallthru
    _
  // Predicated region
  $region6: #{alt_dqn_forward.1} parent=0 // pred_check
    _
  $region7: #{alt_dqn_forward.1} parent=0 // pred_check_branch
    %16 = sbr.rel (0) target = $region9
  $region8: #{alt_dqn_forward.1} parent=0 // pred_region
    _
  $region9: #{alt_dqn_forward.1} parent=0 // pred_fallthru
    _
  // Predicated region
  $region10: #{alt_dqn_forward.1} parent=0 // pred_check
    _
  $region11: #{alt_dqn_forward.1} parent=0 // pred_check_branch
    %18 = sbr.rel (0) target = $region13
  $region12: #{alt_dqn_forward.1} parent=0 // pred_region
    _
  $region13: #{alt_dqn_forward.1} parent=0 // pred_fallthru
    _
  // Predicated region
  $region14: #{alt_dqn_forward.1} parent=0 // pred_check
    _
  $region15: #{alt_dqn_forward.1} parent=0 // pred_check_branch
    %20 = sbr.rel (0) target = $region17
  $region16: #{alt_dqn_forward.1} parent=0 // pred_region
    _
  $region17: #{alt_dqn_forward.1} parent=0 // pred_fallthru
    _
  // Predicated region
  $region18: #{alt_dqn_forward.1} parent=0 // pred_check
    _
  $region19: #{alt_dqn_forward.1} parent=0 // pred_check_branch
    %22 = sbr.rel (0) target = $region21
  $region20: #{alt_dqn_forward.1} parent=0 // pred_region
    _
  $region21: #{alt_dqn_forward.1} parent=0 // pred_fallthru
    _
  // Predicated region
  $region22: #{alt_dqn_forward.1} parent=0 // pred_check
    _
  $region23: #{alt_dqn_forward.1} parent=0 // pred_check_branch
    %24 = sbr.rel (0) target = $region25
  $region24: #{alt_dqn_forward.1} parent=0 // pred_region
    _
  $region25: #{alt_dqn_forward.1} parent=0 // pred_fallthru
    _
  // Predicated region
  $region26: #{alt_dqn_forward.1} parent=0 // pred_check
    _
  $region27: #{alt_dqn_forward.1} parent=0 // pred_check_branch
    %26 = sbr.rel (0) target = $region29
  $region28: #{alt_dqn_forward.1} parent=0 // pred_region
    _
  $region29: #{alt_dqn_forward.1} parent=0 // pred_fallthru
    _
  %v28 = vld [vmem:[%s1] sm:$0xf]
  %v29 = vld [vmem:[%s1 + $0x4] sm:$0xf]
  %v30 = vld [vmem:[%s1 + $0x8] sm:$0xf]
  %v31 = vld [vmem:[%s1 + $0xc] sm:$0xf]
  %v32 = vld [vmem:[%s1 + $0x10] sm:$0xf]
  %v33 = vld [vmem:[%s1 + $0x14] sm:$0xf]
  %v34 = vld [vmem:[%s1 + $0x18] sm:$0xf]
  %v35 = vld [vmem:[%s1 + $0x1c] sm:$0xf]
  %v36 = vld [vmem:[%s1 + $0x20] sm:$0xf]
  %v37 = vld [vmem:[%s1 + $0x24] sm:$0xf]
  %v38 = vld [vmem:[%s1 + $0x28] sm:$0xf]
  %v39 = vld [vmem:[%s1 + $0x2c] sm:$0xf]
  %v40 = vld [vmem:[%s1 + $0x30] sm:$0xf]
  %v41 = vld [vmem:[%s1 + $0x34] sm:$0xf]
  %v42 = vld [vmem:[%s1 + $0x38] sm:$0xf]
  %v43 = vld [vmem:[%s1 + $0x3c] sm:$0xf]
  %v44 = vld [vmem:[%s0] sm:$0xf]
  %v45 = vld [vmem:[%s2] sm:$0xff]
  %v46 = vld [vmem:[%s2 + $0x8] sm:$0xff]
  %v47 = vld [vmem:[%s2 + $0x10] sm:$0xff]
  %v48 = vld [vmem:[%s2 + $0x18] sm:$0xff]
  %v49 = vld [vmem:[%s2 + $0x20] sm:$0xff]
  %v50 = vld [vmem:[%s2 + $0x28] sm:$0xff]
  %v51 = vld [vmem:[%s2 + $0x30] sm:$0xff]
  %v52 = vld [vmem:[%s2 + $0x38] sm:$0xff]
  %v53 = vld [vmem:[%s2 + $0x40] sm:$0xff]
  %v54 = vld [vmem:[%s2 + $0x48] sm:$0xff]
  %v55 = vld [vmem:[%s2 + $0x50] sm:$0xff]
  %v56 = vld [vmem:[%s2 + $0x58] sm:$0xff]
  %v57 = vld [vmem:[%s2 + $0x60] sm:$0xff]
  %v58 = vld [vmem:[%s2 + $0x68] sm:$0xff]
  %v59 = vld [vmem:[%s2 + $0x70] sm:$0xff]
  %v60 = vld [vmem:[%s2 + $0x78] sm:$0xff]
  %62 = vset.pattern.permute.xlu0 0
  %63 = vperm.xlu0 %62, %v45
  %v64 = vpop.permute.xlu0 %63
  %67 = vset.pattern.permute.xlu0 0
  %68 = vperm.xlu0 %67, %v46
  %v69 = vpop.permute.xlu0 %68
  %72 = vset.pattern.permute.xlu0 0
  %73 = vperm.xlu0 %72, %v47
  %v74 = vpop.permute.xlu0 %73
  %77 = vset.pattern.permute.xlu0 0
  %78 = vperm.xlu0 %77, %v48
  %v79 = vpop.permute.xlu0 %78
  %82 = vset.pattern.permute.xlu0 0
  %83 = vperm.xlu0 %82, %v49
  %v84 = vpop.permute.xlu0 %83
  %87 = vset.pattern.permute.xlu0 0
  %88 = vperm.xlu0 %87, %v50
  %v89 = vpop.permute.xlu0 %88
  %92 = vset.pattern.permute.xlu0 0
  %93 = vperm.xlu0 %92, %v51
  %v94 = vpop.permute.xlu0 %93
  %97 = vset.pattern.permute.xlu0 0
  %98 = vperm.xlu0 %97, %v52
  %v99 = vpop.permute.xlu0 %98
  %102 = vset.pattern.permute.xlu0 0
  %103 = vperm.xlu0 %102, %v53
  %v104 = vpop.permute.xlu0 %103
  %107 = vset.pattern.permute.xlu0 0
  %108 = vperm.xlu0 %107, %v54
  %v109 = vpop.permute.xlu0 %108
  %112 = vset.pattern.permute.xlu0 0
  %113 = vperm.xlu0 %112, %v55
  %v114 = vpop.permute.xlu0 %113
  %117 = vset.pattern.permute.xlu0 0
  %118 = vperm.xlu0 %117, %v56
  %v119 = vpop.permute.xlu0 %118
  %122 = vset.pattern.permute.xlu0 0
  %123 = vperm.xlu0 %122, %v57
  %v124 = vpop.permute.xlu0 %123
  %127 = vset.pattern.permute.xlu0 0
  %128 = vperm.xlu0 %127, %v58
  %v129 = vpop.permute.xlu0 %128
  %132 = vset.pattern.permute.xlu0 0
  %133 = vperm.xlu0 %132, %v59
  %v134 = vpop.permute.xlu0 %133
  %137 = vset.pattern.permute.xlu0 0
  %138 = vperm.xlu0 %137, %v60
  %v139 = vpop.permute.xlu0 %138
  %v157 = vunpack.c.l.b16 %v28
  %v158 = vunpack.c.l.b16 %v29
  %v159 = vunpack.c.l.b16 %v30
  %v160 = vunpack.c.l.b16 %v31
  %v161 = vunpack.c.l.b16 %v32
  %v162 = vunpack.c.l.b16 %v33
  %v163 = vunpack.c.l.b16 %v34
  %v164 = vunpack.c.l.b16 %v35
  %v165 = vunpack.c.l.b16 %v36
  %v166 = vunpack.c.l.b16 %v37
  %v167 = vunpack.c.l.b16 %v38
  %v168 = vunpack.c.l.b16 %v39
  %v169 = vunpack.c.l.b16 %v40
  %v170 = vunpack.c.l.b16 %v41
  %v171 = vunpack.c.l.b16 %v42
  %v172 = vunpack.c.l.b16 %v43
  %v173 = vpack.c.b16 %v158, %v157
  %v174 = vpack.c.b16 %v160, %v159
  %v175 = vpack.c.b16 %v162, %v161
  %v176 = vpack.c.b16 %v164, %v163
  %v177 = vpack.c.b16 %v166, %v165
  %v178 = vpack.c.b16 %v168, %v167
  %v179 = vpack.c.b16 %v170, %v169
  %v180 = vpack.c.b16 %v172, %v171
  %vm181 = vcmask 64512
  %v183 = vsel %vm181, %v173, 0
  %v186 = vsel %vm181, %v174, 0
  %v189 = vsel %vm181, %v175, 0
  %v192 = vsel %vm181, %v176, 0
  %v195 = vsel %vm181, %v177, 0
  %v198 = vsel %vm181, %v178, 0
  %v201 = vsel %vm181, %v179, 0
  %v204 = vsel %vm181, %v180, 0
  %vm206 = vcmask 1043456
  %v208 = vsel %vm206, %v44, 0
  %210 = vmatprep.subr.bf16.mxu0 0
  %211 = vmatpush1.bf16.msra.mxu0 0
  %212 = vmatprep.subr.bf16.mxu0 0
  %213 = vmatpush1.bf16.msra.mxu0 0
  %214 = vmatprep.subr.bf16.mxu0 0
  %215 = vmatpush1.bf16.msra.mxu0 0
  %216 = vmatprep.subr.bf16.mxu0 0
  %217 = vmatpush1.bf16.msra.mxu0 0
  %218 = vmatprep.subr.bf16.mxu0 0
  %219 = vmatpush1.bf16.msra.mxu0 0
  %220 = vmatprep.subr.bf16.mxu0 0
  %221 = vmatpush1.bf16.msra.mxu0 0
  %222 = vmatprep.subr.bf16.mxu0 0
  %223 = vmatpush1.bf16.msra.mxu0 0
  %224 = vmatprep.subr.bf16.mxu0 0
  %225 = vmatpush1.bf16.msra.mxu0 %v208
  %226 = vmatprep.subr.bf16.mxu0 0
  %227 = vmatpush2.bf16.msra.mxu0 0
  %228 = vmatprep.subr.bf16.mxu0 0
  %229 = vmatpush2.bf16.msra.mxu0 0
  %230 = vmatprep.subr.bf16.mxu0 0
  %231 = vmatpush2.bf16.msra.mxu0 0
  %232 = vmatprep.subr.bf16.mxu0 0
  %233 = vmatpush2.bf16.msra.mxu0 0
  %234 = vmatprep.subr.bf16.mxu0 0
  %235 = vmatpush2.bf16.msra.mxu0 0
  %236 = vmatprep.subr.bf16.mxu0 0
  %237 = vmatpush2.bf16.msra.mxu0 0
  %238 = vmatprep.subr.bf16.mxu0 0
  %239 = vmatpush2.bf16.msra.mxu0 0
  %240 = vmatprep.subr.bf16.mxu0 0
  %241 = vmatpush2.bf16.msra.mxu0 0
  %242 = vmatprep.mubr.bf16.mxu0 0
  %243 = vmatmul.mubr.bf16.gmra.mxu0 %v183
  %v244 = vpop.f32.mrf.mxu0
  %v245 = vadd.f32 %v64, %v244
  %v246 = vpop.f32.mrf.mxu0
  %v247 = vpop.f32.mrf.mxu0
  %v248 = vadd.f32 %v69, %v247
  %v249 = vpop.f32.mrf.mxu0
  %250 = vmatprep.mubr.bf16.mxu0 0
  %251 = vmatmul.mubr.bf16.gmra.mxu0 %v186
  %v252 = vpop.f32.mrf.mxu0
  %v253 = vadd.f32 %v74, %v252
  %v254 = vpop.f32.mrf.mxu0
  %v255 = vpop.f32.mrf.mxu0
  %v256 = vadd.f32 %v79, %v255
  %v257 = vpop.f32.mrf.mxu0
  %258 = vmatprep.mubr.bf16.mxu0 0
  %259 = vmatmul.mubr.bf16.gmra.mxu0 %v189
  %v260 = vpop.f32.mrf.mxu0
  %v261 = vadd.f32 %v84, %v260
  %v262 = vpop.f32.mrf.mxu0
  %v263 = vpop.f32.mrf.mxu0
  %v264 = vadd.f32 %v89, %v263
  %v265 = vpop.f32.mrf.mxu0
  %266 = vmatprep.mubr.bf16.mxu0 0
  %267 = vmatmul.mubr.bf16.gmra.mxu0 %v192
  %v268 = vpop.f32.mrf.mxu0
  %v269 = vadd.f32 %v94, %v268
  %v270 = vpop.f32.mrf.mxu0
  %v271 = vpop.f32.mrf.mxu0
  %v272 = vadd.f32 %v99, %v271
  %v273 = vpop.f32.mrf.mxu0
  %274 = vmatprep.mubr.bf16.mxu0 0
  %275 = vmatmul.mubr.bf16.gmra.mxu0 %v195
  %v276 = vpop.f32.mrf.mxu0
  %v277 = vadd.f32 %v104, %v276
  %v278 = vpop.f32.mrf.mxu0
  %v279 = vpop.f32.mrf.mxu0
  %v280 = vadd.f32 %v109, %v279
  %v281 = vpop.f32.mrf.mxu0
  %282 = vmatprep.mubr.bf16.mxu0 0
  %283 = vmatmul.mubr.bf16.gmra.mxu0 %v198
  %v284 = vpop.f32.mrf.mxu0
  %v285 = vadd.f32 %v114, %v284
  %v286 = vpop.f32.mrf.mxu0
  %v287 = vpop.f32.mrf.mxu0
  %v288 = vadd.f32 %v119, %v287
  %v289 = vpop.f32.mrf.mxu0
  %290 = vmatprep.mubr.bf16.mxu0 0
  %291 = vmatmul.mubr.bf16.gmra.mxu0 %v201
  %v292 = vpop.f32.mrf.mxu0
  %v293 = vadd.f32 %v124, %v292
  %v294 = vpop.f32.mrf.mxu0
  %v295 = vpop.f32.mrf.mxu0
  %v296 = vadd.f32 %v129, %v295
  %v297 = vpop.f32.mrf.mxu0
  %298 = vmatprep.mubr.bf16.mxu0 0
  %299 = vmatmul.mubr.bf16.gmra.mxu0 %v204
  %v300 = vpop.f32.mrf.mxu0
  %v301 = vadd.f32 %v134, %v300
  %v302 = vpop.f32.mrf.mxu0
  %v303 = vpop.f32.mrf.mxu0
  %v304 = vadd.f32 %v139, %v303
  %v305 = vpop.f32.mrf.mxu0
  %306 = vdwg.mxu0
  %v307 = vmax.f32 %v245, 0.0
  %v308 = vmax.f32 %v248, 0.0
  %v309 = vmax.f32 %v253, 0.0
  %v310 = vmax.f32 %v256, 0.0
  %v311 = vmax.f32 %v261, 0.0
  %v312 = vmax.f32 %v264, 0.0
  %v313 = vmax.f32 %v269, 0.0
  %v314 = vmax.f32 %v272, 0.0
  %v315 = vmax.f32 %v277, 0.0
  %v316 = vmax.f32 %v280, 0.0
  %v317 = vmax.f32 %v285, 0.0
  %v318 = vmax.f32 %v288, 0.0
  %v319 = vmax.f32 %v293, 0.0
  %v320 = vmax.f32 %v296, 0.0
  %v321 = vmax.f32 %v301, 0.0
  %v322 = vmax.f32 %v304, 0.0
  %v323 = vld [vmem:[%s3] sm:$0xf]
  %v324 = vld [vmem:[%s3 + $0x4] sm:$0xf]
  %v325 = vld [vmem:[%s3 + $0x8] sm:$0xf]
  %v326 = vld [vmem:[%s3 + $0xc] sm:$0xf]
  %v327 = vld [vmem:[%s3 + $0x10] sm:$0xf]
  %v328 = vld [vmem:[%s3 + $0x14] sm:$0xf]
  %v329 = vld [vmem:[%s3 + $0x18] sm:$0xf]
  %v330 = vld [vmem:[%s3 + $0x1c] sm:$0xf]
  %v331 = vld [vmem:[%s3 + $0x20] sm:$0xf]
  %v332 = vld [vmem:[%s3 + $0x24] sm:$0xf]
  %v333 = vld [vmem:[%s3 + $0x28] sm:$0xf]
  %v334 = vld [vmem:[%s3 + $0x2c] sm:$0xf]
  %v335 = vld [vmem:[%s3 + $0x30] sm:$0xf]
  %v336 = vld [vmem:[%s3 + $0x34] sm:$0xf]
  %v337 = vld [vmem:[%s3 + $0x38] sm:$0xf]
  %v338 = vld [vmem:[%s3 + $0x3c] sm:$0xf]
  %v339 = vpack.c.bf16 %v308, %v307
  %v340 = vpack.c.bf16 %v310, %v309
  %v341 = vpack.c.bf16 %v312, %v311
  %v342 = vpack.c.bf16 %v314, %v313
  %v343 = vpack.c.bf16 %v316, %v315
  %v344 = vpack.c.bf16 %v318, %v317
  %v345 = vpack.c.bf16 %v320, %v319
  %v346 = vpack.c.bf16 %v322, %v321
  %v347 = vld [vmem:[%s4] sm:$0xff]
  %v348 = vld [vmem:[%s4 + $0x8] sm:$0xff]
  %v349 = vld [vmem:[%s4 + $0x10] sm:$0xff]
  %v350 = vld [vmem:[%s4 + $0x18] sm:$0xff]
  %v351 = vld [vmem:[%s4 + $0x20] sm:$0xff]
  %v352 = vld [vmem:[%s4 + $0x28] sm:$0xff]
  %v353 = vld [vmem:[%s4 + $0x30] sm:$0xff]
  %v354 = vld [vmem:[%s4 + $0x38] sm:$0xff]
  %v355 = vld [vmem:[%s4 + $0x40] sm:$0xff]
  %v356 = vld [vmem:[%s4 + $0x48] sm:$0xff]
  %v357 = vld [vmem:[%s4 + $0x50] sm:$0xff]
  %v358 = vld [vmem:[%s4 + $0x58] sm:$0xff]
  %v359 = vld [vmem:[%s4 + $0x60] sm:$0xff]
  %v360 = vld [vmem:[%s4 + $0x68] sm:$0xff]
  %v361 = vld [vmem:[%s4 + $0x70] sm:$0xff]
  %v362 = vld [vmem:[%s4 + $0x78] sm:$0xff]
  %364 = vset.pattern.permute.xlu0 0
  %365 = vperm.xlu0 %364, %v347
  %v366 = vpop.permute.xlu0 %365
  %369 = vset.pattern.permute.xlu0 0
  %370 = vperm.xlu0 %369, %v348
  %v371 = vpop.permute.xlu0 %370
  %374 = vset.pattern.permute.xlu0 0
  %375 = vperm.xlu0 %374, %v349
  %v376 = vpop.permute.xlu0 %375
  %379 = vset.pattern.permute.xlu0 0
  %380 = vperm.xlu0 %379, %v350
  %v381 = vpop.permute.xlu0 %380
  %384 = vset.pattern.permute.xlu0 0
  %385 = vperm.xlu0 %384, %v351
  %v386 = vpop.permute.xlu0 %385
  %389 = vset.pattern.permute.xlu0 0
  %390 = vperm.xlu0 %389, %v352
  %v391 = vpop.permute.xlu0 %390
  %394 = vset.pattern.permute.xlu0 0
  %395 = vperm.xlu0 %394, %v353
  %v396 = vpop.permute.xlu0 %395
  %399 = vset.pattern.permute.xlu0 0
  %400 = vperm.xlu0 %399, %v354
  %v401 = vpop.permute.xlu0 %400
  %404 = vset.pattern.permute.xlu0 0
  %405 = vperm.xlu0 %404, %v355
  %v406 = vpop.permute.xlu0 %405
  %409 = vset.pattern.permute.xlu0 0
  %410 = vperm.xlu0 %409, %v356
  %v411 = vpop.permute.xlu0 %410
  %414 = vset.pattern.permute.xlu0 0
  %415 = vperm.xlu0 %414, %v357
  %v416 = vpop.permute.xlu0 %415
  %419 = vset.pattern.permute.xlu0 0
  %420 = vperm.xlu0 %419, %v358
  %v421 = vpop.permute.xlu0 %420
  %424 = vset.pattern.permute.xlu0 0
  %425 = vperm.xlu0 %424, %v359
  %v426 = vpop.permute.xlu0 %425
  %429 = vset.pattern.permute.xlu0 0
  %430 = vperm.xlu0 %429, %v360
  %v431 = vpop.permute.xlu0 %430
  %434 = vset.pattern.permute.xlu0 0
  %435 = vperm.xlu0 %434, %v361
  %v436 = vpop.permute.xlu0 %435
  %439 = vset.pattern.permute.xlu0 0
  %440 = vperm.xlu0 %439, %v362
  %v441 = vpop.permute.xlu0 %440
  %v459 = vunpack.c.l.b16 %v323
  %v460 = vunpack.c.l.b16 %v324
  %v461 = vunpack.c.l.b16 %v325
  %v462 = vunpack.c.l.b16 %v326
  %v463 = vunpack.c.l.b16 %v327
  %v464 = vunpack.c.l.b16 %v328
  %v465 = vunpack.c.l.b16 %v329
  %v466 = vunpack.c.l.b16 %v330
  %v467 = vunpack.c.l.b16 %v331
  %v468 = vunpack.c.l.b16 %v332
  %v469 = vunpack.c.l.b16 %v333
  %v470 = vunpack.c.l.b16 %v334
  %v471 = vunpack.c.l.b16 %v335
  %v472 = vunpack.c.l.b16 %v336
  %v473 = vunpack.c.l.b16 %v337
  %v474 = vunpack.c.l.b16 %v338
  %v475 = vpack.c.b16 %v460, %v459
  %v476 = vpack.c.b16 %v462, %v461
  %v477 = vpack.c.b16 %v464, %v463
  %v478 = vpack.c.b16 %v466, %v465
  %v479 = vpack.c.b16 %v468, %v467
  %v480 = vpack.c.b16 %v470, %v469
  %v481 = vpack.c.b16 %v472, %v471
  %v482 = vpack.c.b16 %v474, %v473
  %491 = vmatprep.subr.bf16.mxu0 0
  %492 = vmatpush1.bf16.msra.mxu0 %v346
  %493 = vmatprep.subr.bf16.mxu0 0
  %494 = vmatpush1.bf16.msra.mxu0 %v345
  %495 = vmatprep.subr.bf16.mxu0 0
  %496 = vmatpush1.bf16.msra.mxu0 %v344
  %497 = vmatprep.subr.bf16.mxu0 0
  %498 = vmatpush1.bf16.msra.mxu0 %v343
  %499 = vmatprep.subr.bf16.mxu0 0
  %500 = vmatpush1.bf16.msra.mxu0 %v342
  %501 = vmatprep.subr.bf16.mxu0 0
  %502 = vmatpush1.bf16.msra.mxu0 %v341
  %503 = vmatprep.subr.bf16.mxu0 0
  %504 = vmatpush1.bf16.msra.mxu0 %v340
  %505 = vmatprep.subr.bf16.mxu0 0
  %506 = vmatpush1.bf16.msra.mxu0 %v339
  %507 = vmatprep.subr.bf16.mxu0 0
  %508 = vmatpush2.bf16.msra.mxu0 0
  %509 = vmatprep.subr.bf16.mxu0 0
  %510 = vmatpush2.bf16.msra.mxu0 0
  %511 = vmatprep.subr.bf16.mxu0 0
  %512 = vmatpush2.bf16.msra.mxu0 0
  %513 = vmatprep.subr.bf16.mxu0 0
  %514 = vmatpush2.bf16.msra.mxu0 0
  %515 = vmatprep.subr.bf16.mxu0 0
  %516 = vmatpush2.bf16.msra.mxu0 0
  %517 = vmatprep.subr.bf16.mxu0 0
  %518 = vmatpush2.bf16.msra.mxu0 0
  %519 = vmatprep.subr.bf16.mxu0 0
  %520 = vmatpush2.bf16.msra.mxu0 0
  %521 = vmatprep.subr.bf16.mxu0 0
  %522 = vmatpush2.bf16.msra.mxu0 0
  %523 = vmatprep.mubr.bf16.mxu0 0
  %524 = vmatmul.mubr.bf16.gmra.mxu0 %v475
  %v525 = vpop.f32.mrf.mxu0
  %v526 = vadd.f32 %v366, %v525
  %v527 = vpop.f32.mrf.mxu0
  %v528 = vpop.f32.mrf.mxu0
  %v529 = vadd.f32 %v371, %v528
  %v530 = vpop.f32.mrf.mxu0
  %531 = vmatprep.mubr.bf16.mxu0 0
  %532 = vmatmul.mubr.bf16.gmra.mxu0 %v476
  %v533 = vpop.f32.mrf.mxu0
  %v534 = vadd.f32 %v376, %v533
  %v535 = vpop.f32.mrf.mxu0
  %v536 = vpop.f32.mrf.mxu0
  %v537 = vadd.f32 %v381, %v536
  %v538 = vpop.f32.mrf.mxu0
  %539 = vmatprep.mubr.bf16.mxu0 0
  %540 = vmatmul.mubr.bf16.gmra.mxu0 %v477
  %v541 = vpop.f32.mrf.mxu0
  %v542 = vadd.f32 %v386, %v541
  %v543 = vpop.f32.mrf.mxu0
  %v544 = vpop.f32.mrf.mxu0
  %v545 = vadd.f32 %v391, %v544
  %v546 = vpop.f32.mrf.mxu0
  %547 = vmatprep.mubr.bf16.mxu0 0
  %548 = vmatmul.mubr.bf16.gmra.mxu0 %v478
  %v549 = vpop.f32.mrf.mxu0
  %v550 = vadd.f32 %v396, %v549
  %v551 = vpop.f32.mrf.mxu0
  %v552 = vpop.f32.mrf.mxu0
  %v553 = vadd.f32 %v401, %v552
  %v554 = vpop.f32.mrf.mxu0
  %555 = vmatprep.mubr.bf16.mxu0 0
  %556 = vmatmul.mubr.bf16.gmra.mxu0 %v479
  %v557 = vpop.f32.mrf.mxu0
  %v558 = vadd.f32 %v406, %v557
  %v559 = vpop.f32.mrf.mxu0
  %v560 = vpop.f32.mrf.mxu0
  %v561 = vadd.f32 %v411, %v560
  %v562 = vpop.f32.mrf.mxu0
  %563 = vmatprep.mubr.bf16.mxu0 0
  %564 = vmatmul.mubr.bf16.gmra.mxu0 %v480
  %v565 = vpop.f32.mrf.mxu0
  %v566 = vadd.f32 %v416, %v565
  %v567 = vpop.f32.mrf.mxu0
  %v568 = vpop.f32.mrf.mxu0
  %v569 = vadd.f32 %v421, %v568
  %v570 = vpop.f32.mrf.mxu0
  %571 = vmatprep.mubr.bf16.mxu0 0
  %572 = vmatmul.mubr.bf16.gmra.mxu0 %v481
  %v573 = vpop.f32.mrf.mxu0
  %v574 = vadd.f32 %v426, %v573
  %v575 = vpop.f32.mrf.mxu0
  %v576 = vpop.f32.mrf.mxu0
  %v577 = vadd.f32 %v431, %v576
  %v578 = vpop.f32.mrf.mxu0
  %579 = vmatprep.mubr.bf16.mxu0 0
  %580 = vmatmul.mubr.bf16.gmra.mxu0 %v482
  %v581 = vpop.f32.mrf.mxu0
  %v582 = vadd.f32 %v436, %v581
  %v583 = vpop.f32.mrf.mxu0
  %v584 = vpop.f32.mrf.mxu0
  %v585 = vadd.f32 %v441, %v584
  %v586 = vpop.f32.mrf.mxu0
  %587 = vdwg.mxu0
  %v588 = vmax.f32 %v526, 0.0
  %v589 = vmax.f32 %v529, 0.0
  %v590 = vmax.f32 %v534, 0.0
  %v591 = vmax.f32 %v537, 0.0
  %v592 = vmax.f32 %v542, 0.0
  %v593 = vmax.f32 %v545, 0.0
  %v594 = vmax.f32 %v550, 0.0
  %v595 = vmax.f32 %v553, 0.0
  %v596 = vmax.f32 %v558, 0.0
  %v597 = vmax.f32 %v561, 0.0
  %v598 = vmax.f32 %v566, 0.0
  %v599 = vmax.f32 %v569, 0.0
  %v600 = vmax.f32 %v574, 0.0
  %v601 = vmax.f32 %v577, 0.0
  %v602 = vmax.f32 %v582, 0.0
  %v603 = vmax.f32 %v585, 0.0
  %v604 = vld [vmem:[%s5] sm:$0xff]
  %v605 = vld [vmem:[%s5 + $0x8] sm:$0xff]
  %v606 = vld [vmem:[%s5 + $0x10] sm:$0xff]
  %v607 = vld [vmem:[%s5 + $0x18] sm:$0xff]
  %v608 = vld [vmem:[%s5 + $0x20] sm:$0xff]
  %v609 = vld [vmem:[%s5 + $0x28] sm:$0xff]
  %v610 = vld [vmem:[%s5 + $0x30] sm:$0xff]
  %v611 = vld [vmem:[%s5 + $0x38] sm:$0xff]
  %v612 = vld [vmem:[%s5 + $0x40] sm:$0xff]
  %v613 = vld [vmem:[%s5 + $0x48] sm:$0xff]
  %v614 = vld [vmem:[%s5 + $0x50] sm:$0xff]
  %v615 = vld [vmem:[%s5 + $0x58] sm:$0xff]
  %v616 = vld [vmem:[%s5 + $0x60] sm:$0xff]
  %v617 = vld [vmem:[%s5 + $0x68] sm:$0xff]
  %v618 = vld [vmem:[%s5 + $0x70] sm:$0xff]
  %v619 = vld [vmem:[%s5 + $0x78] sm:$0xff]
  %621 = vset.pattern.permute.xlu0 0
  %622 = vperm.xlu0 %621, %v604
  %v623 = vpop.permute.xlu0 %622
  %626 = vset.pattern.permute.xlu0 0
  %627 = vperm.xlu0 %626, %v605
  %v628 = vpop.permute.xlu0 %627
  %631 = vset.pattern.permute.xlu0 0
  %632 = vperm.xlu0 %631, %v606
  %v633 = vpop.permute.xlu0 %632
  %636 = vset.pattern.permute.xlu0 0
  %637 = vperm.xlu0 %636, %v607
  %v638 = vpop.permute.xlu0 %637
  %641 = vset.pattern.permute.xlu0 0
  %642 = vperm.xlu0 %641, %v608
  %v643 = vpop.permute.xlu0 %642
  %646 = vset.pattern.permute.xlu0 0
  %647 = vperm.xlu0 %646, %v609
  %v648 = vpop.permute.xlu0 %647
  %651 = vset.pattern.permute.xlu0 0
  %652 = vperm.xlu0 %651, %v610
  %v653 = vpop.permute.xlu0 %652
  %656 = vset.pattern.permute.xlu0 0
  %657 = vperm.xlu0 %656, %v611
  %v658 = vpop.permute.xlu0 %657
  %661 = vset.pattern.permute.xlu0 0
  %662 = vperm.xlu0 %661, %v612
  %v663 = vpop.permute.xlu0 %662
  %666 = vset.pattern.permute.xlu0 0
  %667 = vperm.xlu0 %666, %v613
  %v668 = vpop.permute.xlu0 %667
  %671 = vset.pattern.permute.xlu0 0
  %672 = vperm.xlu0 %671, %v614
  %v673 = vpop.permute.xlu0 %672
  %676 = vset.pattern.permute.xlu0 0
  %677 = vperm.xlu0 %676, %v615
  %v678 = vpop.permute.xlu0 %677
  %681 = vset.pattern.permute.xlu0 0
  %682 = vperm.xlu0 %681, %v616
  %v683 = vpop.permute.xlu0 %682
  %686 = vset.pattern.permute.xlu0 0
  %687 = vperm.xlu0 %686, %v617
  %v688 = vpop.permute.xlu0 %687
  %691 = vset.pattern.permute.xlu0 0
  %692 = vperm.xlu0 %691, %v618
  %v693 = vpop.permute.xlu0 %692
  %696 = vset.pattern.permute.xlu0 0
  %697 = vperm.xlu0 %696, %v619
  %v698 = vpop.permute.xlu0 %697
  %v700 = vmul.f32 %v588, %v623
  %v701 = vmul.f32 %v589, %v628
  %v702 = vmul.f32 %v590, %v633
  %v703 = vmul.f32 %v591, %v638
  %v704 = vmul.f32 %v592, %v643
  %v705 = vmul.f32 %v593, %v648
  %v706 = vmul.f32 %v594, %v653
  %v707 = vmul.f32 %v595, %v658
  %v708 = vmul.f32 %v596, %v663
  %v709 = vmul.f32 %v597, %v668
  %v710 = vmul.f32 %v598, %v673
  %v711 = vmul.f32 %v599, %v678
  %v712 = vmul.f32 %v600, %v683
  %v713 = vmul.f32 %v601, %v688
  %v714 = vmul.f32 %v602, %v693
  %v715 = vmul.f32 %v603, %v698
  %v716 = vadd.f32 %v700, %v701
  %v717 = vadd.f32 %v716, %v702
  %v718 = vadd.f32 %v717, %v703
  %v719 = vadd.f32 %v718, %v704
  %v720 = vadd.f32 %v719, %v705
  %v721 = vadd.f32 %v720, %v706
  %v722 = vadd.f32 %v721, %v707
  %v723 = vadd.f32 %v722, %v708
  %v724 = vadd.f32 %v723, %v709
  %v725 = vadd.f32 %v724, %v710
  %v726 = vadd.f32 %v725, %v711
  %v727 = vadd.f32 %v726, %v712
  %v728 = vadd.f32 %v727, %v713
  %v729 = vadd.f32 %v728, %v714
  %v730 = vadd.f32 %v729, %v715
  %v731 = vrot.slane %v730, 4
  %v732 = vadd.f32 %v730, %v731
  %v733 = vrot.slane %v732, 2
  %v734 = vadd.f32 %v732, %v733
  %v735 = vrot.slane %v734, 1
  %v736 = vadd.f32 %v734, %v735
  %s737 = sld [smem:[#allocation2]]
  %v738 = vstv %s737
  %v739 = vadd.f32 %v736, %v738
  %740 = vst [vmem:[%s7] sm:$0x1] %v739
  // Predicated region
  $region30: #{alt_dqn_forward.1} parent=0 // pred_check
    _
  $region31: #{alt_dqn_forward.1} parent=0 // pred_check_branch
    %742 = sbr.rel (0) target = $region33
  $region32: #{alt_dqn_forward.1} parent=0 // pred_region
    _
  $region33: #{alt_dqn_forward.1} parent=0 // pred_fallthru
    _
  // Predicated region
  $region34: #{alt_dqn_forward.1} parent=0 // pred_check
    _
  $region35: #{alt_dqn_forward.1} parent=0 // pred_check_branch
    %744 = sbr.rel (0) target = $region37
  $region36: #{alt_dqn_forward.1} parent=0 // pred_region
    _
  $region37: #{alt_dqn_forward.1} parent=0 // pred_fallthru
    _

</llo_original>
